<compile_context>
chip_gen: v5e
topology: v5e:2x2
jax: 0.10.0
libtpu: 0.0.40
codegen_flags: <defaults>
</compile_context>

<pallas_src>
import jax
import jax.numpy as jnp
from jax.experimental import pallas as pl
from jax.experimental.pallas import tpu as pltpu


def patch_embed_kernel(p_ref, w_ref, b_ref, o_ref):
    """One grid step: (block_m, K) @ (K, D) + bias -> (block_m, D)."""
    acc = jnp.dot(p_ref[...], w_ref[...], preferred_element_type=jnp.float32)
    o_ref[...] = (acc + b_ref[...]).astype(o_ref.dtype)


def _round_up(a, b):
    return ((a + b - 1) // b) * b


def _shift_concat_patches(x, patch_size, shift_size):
    """torch.roll x5 + channel concat + non-overlapping patch extraction (im2col).

    Implemented as ONE wrap-pad followed by 5 slices (instead of 5 materialized rolls).
    Returns (B*nH*nW, 5*C*P*P) in x.dtype, patch features ordered (c, ky, kx) to match
    PyTorch Conv2d weight flattening.
    """
    B, C, H, W = x.shape
    s, P = shift_size, patch_size
    xp = jnp.pad(x, ((0, 0), (0, 0), (s, s), (s, s)), mode="wrap")
    # torch.roll(x, (dy, dx), dims=(2, 3)) == xp[:, :, s-dy : s-dy+H, s-dx : s-dx+W]
    shifts = [(0, 0), (-s, -s), (s, s), (-s, s), (s, -s)]        # module's concat order
    views = [xp[:, :, s - dy:s - dy + H, s - dx:s - dx + W] for dy, dx in shifts]
    xc = jnp.concatenate(views, axis=1)                          # (B, 5C, H, W)
    C5 = xc.shape[1]
    nH, nW = H // P, W // P
    p = xc.reshape(B, C5, nH, P, nW, P).transpose(0, 2, 4, 1, 3, 5)  # (B,nH,nW,C5,P,P)
    return p.reshape(B * nH * nW, C5 * P * P)


def shifted_patch_tokenization(x, w_conv, b_conv, *, patch_size, shift_size,
                               block_m=256, out_dtype=jnp.float32):
    """x: (B, C, H, W) f32.  w_conv: (D, 5*C, P, P), b_conv: (D,)  (Conv2d params)."""
    B, C, H, W = x.shape
    D = w_conv.shape[0]
    P = patch_size
    nH, nW = H // P, W // P
    N = nH * nW

    # bf16 BEFORE the layout ops -> every HBM pass over the 5x-expanded data is half-width.
    patches = _shift_concat_patches(x.astype(jnp.bfloat16), P, shift_size)   # (M, K)
    M, K = patches.shape

    # Row blocking: block_m a multiple of 16 (bf16 sublane packing); small problems collapse
    # to one grid step, larger M is zero-padded to a block multiple (no divisibility assert).
    block_m = max(16, (block_m // 16) * 16)
    bm = _round_up(M, 16) if M <= block_m else block_m
    M_pad = _round_up(M, bm)
    if M_pad != M:
        patches = jnp.pad(patches, ((0, M_pad - M), (0, 0)))
    grid_m = M_pad // bm

    w_mat = w_conv.reshape(D, K).T.astype(jnp.bfloat16)          # (K, D) MXU operand
    b_mat = b_conv.reshape(1, D).astype(jnp.float32)             # bias add stays f32

    # TODO(synk): zero-pad K to a multiple of 256 (v6e/v7x) / 128 (v5e) once K is large
    # enough that the kernel becomes MXU-bound; at this size it is memory/overhead-bound.

    cost = pl.CostEstimate(
        flops=2 * M_pad * K * D,
        transcendentals=0,
        bytes_accessed=(M_pad * K * 2 + K * D * 2 + D * 4
                        + M_pad * D * jnp.dtype(out_dtype).itemsize),
    )

    out = pl.pallas_call(
        patch_embed_kernel,
        out_shape=jax.ShapeDtypeStruct((M_pad, D), out_dtype),
        grid=(grid_m,),
        in_specs=[
            pl.BlockSpec((bm, K), lambda i: (i, 0)),             # patch rows
            pl.BlockSpec((K, D), lambda i: (0, 0)),              # weights (VMEM-resident)
            pl.BlockSpec((1, D), lambda i: (0, 0)),              # bias   (VMEM-resident)
        ],
        out_specs=pl.BlockSpec((bm, D), lambda i: (i, 0)),
        compiler_params=pltpu.CompilerParams(
            dimension_semantics=("parallel",)),                  # row blocks -> 2 TCs on v7x
        cost_estimate=cost,
    )(patches, w_mat, b_mat)

    return out[:M].reshape(B, N, D)


def reference(x, w_conv, b_conv, *, patch_size, shift_size):
    """Pure-JAX replica of the PyTorch forward (f32 conv path)."""
    s, P = shift_size, patch_size
    shifts = [(0, 0), (-s, -s), (s, s), (-s, s), (s, -s)]
    xc = jnp.concatenate([jnp.roll(x, sh, axis=(2, 3)) for sh in shifts], axis=1)
    y = jax.lax.conv_general_dilated(
        xc, w_conv, window_strides=(P, P), padding="VALID",
        dimension_numbers=("NCHW", "OIHW", "NCHW"))
    y = y + b_conv[None, :, None, None]
    B, D, nH, nW = y.shape
    return y.reshape(B, D, nH * nW).transpose(0, 2, 1)


if __name__ == "__main__":
    # Small shapes consistent with the module: batch=2, in_channels=1, 32x32 images,
    # patch_size=8, shift_size=4 (so the module's 5*C conv in-channels hold), hidden_dim=128.
    B, C, H, W = 2, 1, 32, 32
    P, S, D = 8, 4, 128
    K = 5 * C * P * P                                            # 320

    key = jax.random.PRNGKey(0)
    kx, kw, kb = jax.random.split(key, 3)

    x = jax.random.normal(kx, (B, C, H, W), dtype=jnp.float32)
    w_conv = jax.random.normal(kw, (D, 5 * C, P, P), dtype=jnp.float32) * (K ** -0.5)
    b_conv = jax.random.normal(kb, (D,), dtype=jnp.float32) * 0.01

    out = shifted_patch_tokenization(x, w_conv, b_conv, patch_size=P, shift_size=S)
    out = jax.block_until_ready(out)

    ref = reference(x, w_conv, b_conv, patch_size=P, shift_size=S)
    assert out.shape == (B, (H // P) * (W // P), D)
    # bf16 MXU operands (f32 accumulation) vs f32 reference -> loose tolerance.
    assert jnp.allclose(out, ref, atol=5e-2, rtol=5e-2), "mismatch vs reference"

    print("KERNEL_OK")
</pallas_src>

<mosaic_0001>
module attributes {stable_mosaic.version = 11 : i64} {
  func.func @patch_embed_kernel(%arg0: i32, %arg1: memref<32x320xbf16, #tpu.memory_space<vmem>>, %arg2: memref<320x128xbf16, #tpu.memory_space<vmem>>, %arg3: memref<1x128xf32, #tpu.memory_space<vmem>>, %arg4: memref<32x128xf32, #tpu.memory_space<vmem>>) attributes {dimension_semantics = [#tpu.dimension_semantics<parallel>], iteration_bounds = array<i64: 1>, scalar_prefetch = 0 : i64, scratch_operands = 0 : i64, tpu.core_type = #tpu.core_type<tc>, window_params = [{transform_indices = @transform_0, window_bounds = array<i64: 32, 320>}, {pipeline_mode = #tpu.pipeline_mode<synchronous>, transform_indices = @transform_1, window_bounds = array<i64: 320, 128>}, {pipeline_mode = #tpu.pipeline_mode<synchronous>, transform_indices = @transform_2, window_bounds = array<i64: 1, 128>}, {transform_indices = @transform_3, window_bounds = array<i64: 32, 128>}]} {
    %c0 = arith.constant 0 : index
    %c0_0 = arith.constant 0 : index
    %0 = vector.load %arg1[%c0, %c0_0] : memref<32x320xbf16, #tpu.memory_space<vmem>>, vector<32x320xbf16>
    %c0_1 = arith.constant 0 : index
    %c0_2 = arith.constant 0 : index
    %1 = vector.load %arg2[%c0_1, %c0_2] : memref<320x128xbf16, #tpu.memory_space<vmem>>, vector<320x128xbf16>
    %cst = arith.constant dense<0.000000e+00> : vector<32x128xf32>
    %2 = tpu.matmul %0, %1, %cst {dimension_numbers = #tpu.dot_dimension_numbers<[1], [0], [0], [1], [0, 0, 1, 1], [], []>} : vector<32x320xbf16>, vector<320x128xbf16>, vector<32x128xf32> -> vector<32x128xf32>
    %c0_3 = arith.constant 0 : index
    %c0_4 = arith.constant 0 : index
    %3 = vector.load %arg3[%c0_3, %c0_4] : memref<1x128xf32, #tpu.memory_space<vmem>>, vector<1x128xf32>
    %4 = vector.broadcast %3 : vector<1x128xf32> to vector<32x128xf32>
    %5 = arith.addf %2, %4 : vector<32x128xf32>
    %c0_5 = arith.constant 0 : index
    %c0_6 = arith.constant 0 : index
    %6 = vector.load %arg4[%c0_5, %c0_6] : memref<32x128xf32, #tpu.memory_space<vmem>>, vector<32x128xf32>
    tpu.vector_store %arg4[%c0_5, %c0_6], %5 {strides = array<i32>} : memref<32x128xf32, #tpu.memory_space<vmem>>, vector<32x128xf32>,
    return
  }
  func.func @transform_0(%arg0: i32) -> (i32, i32) {
    %c0_i32 = arith.constant 0 : i32
    %c0_i32_0 = arith.constant 0 : i32
    return %arg0, %c0_i32 : i32, i32
  }
  func.func @transform_1(%arg0: i32) -> (i32, i32) {
    %c0_i32 = arith.constant 0 : i32
    %c0_i32_0 = arith.constant 0 : i32
    %c0_i32_1 = arith.constant 0 : i32
    return %c0_i32, %c0_i32_0 : i32, i32
  }
  func.func @transform_2(%arg0: i32) -> (i32, i32) {
    %c0_i32 = arith.constant 0 : i32
    %c0_i32_0 = arith.constant 0 : i32
    %c0_i32_1 = arith.constant 0 : i32
    return %c0_i32, %c0_i32_0 : i32, i32
  }
  func.func @transform_3(%arg0: i32) -> (i32, i32) {
    %c0_i32 = arith.constant 0 : i32
    %c0_i32_0 = arith.constant 0 : i32
    return %arg0, %c0_i32 : i32, i32
  }
}

</mosaic_0001>

<llo_original>
// kernel: tpu_custom_call.1
$region0: #{tpu_custom_call.1}
  #allocation0 [shape = 'u32[]', space=smem, size = 0x4, offset = 0x4, fixed_abs, tag = 'smem constant byte address 0x4 - core index']
  #allocation1 [shape = 'u32[72,128]{1,0:T(1,128)}', space=vmem, size = 0x9000, scoped, tag = 'internal scratch']
  %s0 = inlined_call_operand.hbm [shape: bf16[32,320], index: 0, kind: input, shape index: {}]
  %s1 = inlined_call_operand.hbm [shape: bf16[320,128], index: 1, kind: input, shape index: {}]
  %s2 = inlined_call_operand.vmem [shape: f32[1,128], index: 2, kind: input, shape index: {}]
  %s3 = inlined_call_operand.hbm [shape: f32[32,128], index: 3, kind: output, shape index: {}]
  %s4 = sld [smem:[#allocation0]]
  $region30: #{tpu_custom_call.1} parent=0
    _
  %s6 = ssub.s32 1, %s4
  %s7 = scalar_select 0, %s6, %s4
  $region1: #{tpu_custom_call.1} parent=0
    #allocation2 [shape = 'u8[24576]{0}', space=vmem, size = 0x6000, scoped, tag = 'input window, operand 0, single buffered']
    #allocation3 [shape = 's32[1]{0}', space=sflag, size = 0x4, scoped, tag = 'scoped memory for tpu_custom_call.1']
    #allocation4 [shape = 's32[1]{0}', space=sflag, size = 0x4, scoped, tag = 'scoped memory for tpu_custom_call.1']
    #allocation5 [shape = 'u8[81920]{0}', space=vmem, size = 0x14000, scoped, tag = 'input window, operand 1, single buffered']
    #allocation6 [shape = 's32[1]{0}', space=sflag, size = 0x4, scoped, tag = 'scoped memory for tpu_custom_call.1']
    #allocation7 [shape = 'u8[16384]{0}', space=vmem, size = 0x4000, scoped, tag = 'output window, operand 0, single buffered']
    %8 = vsyncpa [#allocation3], 0
    %9 = vsyncpa [#allocation6], 0
    %10 = vsyncpa [#allocation4], 0
    // Predicated region
    $region2: #{tpu_custom_call.1} parent=1 // pred_check
      _
    $region3: #{tpu_custom_call.1} parent=1 // pred_check_branch
      %12 = sbr.rel (0) target = $region5
    $region4: #{tpu_custom_call.1} parent=1 // pred_region
      %14 = vsyncadd [#allocation3], 0
      %s15 = sshll.u32 %s0, 4
      %s16 = int_to_ptr.hbm [resolvable:$true] %s15
      %s17 = sshll.u32 [#allocation2], 4
      %s18 = int_to_ptr.vmem [resolvable:$true] %s17
      %23 = dma.hbm_to_vmem [thread:$0]  %s16, 768, %s18, [#allocation3], 192, 192, 12
    $region5: #{tpu_custom_call.1} parent=1 // pred_fallthru
      _
    // Predicated region
    $region6: #{tpu_custom_call.1} parent=1 // pred_check
      _
    $region7: #{tpu_custom_call.1} parent=1 // pred_check_branch
      %25 = sbr.rel (0) target = $region9
    $region8: #{tpu_custom_call.1} parent=1 // pred_region
      %27 = vsyncadd [#allocation6], 0
      %s28 = sshll.u32 %s1, 4
      %s29 = int_to_ptr.hbm [resolvable:$true] %s28
      %s30 = sshll.u32 [#allocation5], 4
      %s31 = int_to_ptr.vmem [resolvable:$true] %s30
      %36 = dma.hbm_to_vmem [thread:$0]  %s29, 2560, %s31, [#allocation6], 64, 64, 4
    $region9: #{tpu_custom_call.1} parent=1 // pred_fallthru
      _
    // Predicated region
    $region10: #{tpu_custom_call.1} parent=1 // pred_check
      _
    $region11: #{tpu_custom_call.1} parent=1 // pred_check_branch
      %38 = sbr.rel (0) target = $region13
    $region12: #{tpu_custom_call.1} parent=1 // pred_region
      _
    $region13: #{tpu_custom_call.1} parent=1 // pred_fallthru
      _
    // Predicated region
    $region14: #{tpu_custom_call.1} parent=1 // pred_check
      _
    $region15: #{tpu_custom_call.1} parent=1 // pred_check_branch
      %40 = sbr.rel (0) target = $region17
    $region16: #{tpu_custom_call.1} parent=1 // pred_region
      %42 = dma.done [#allocation3], 768
    $region17: #{tpu_custom_call.1} parent=1 // pred_fallthru
      _
    // Predicated region
    $region18: #{tpu_custom_call.1} parent=1 // pred_check
      _
    $region19: #{tpu_custom_call.1} parent=1 // pred_check_branch
      %44 = sbr.rel (0) target = $region21
    $region20: #{tpu_custom_call.1} parent=1 // pred_region
      %46 = dma.done [#allocation6], 2560
    $region21: #{tpu_custom_call.1} parent=1 // pred_fallthru
      _
    %v48 = vld [vmem:[#allocation2] sm:$0xff]
    %v49 = vld [vmem:[#allocation2 + $0x8] sm:$0xf]
    %v50 = vld [vmem:[#allocation2 + $0xc] sm:$0xff]
    %v51 = vld [vmem:[#allocation2 + $0x14] sm:$0xf]
    %v52 = vld [vmem:[#allocation2 + $0x18] sm:$0xff]
    %v53 = vld [vmem:[#allocation2 + $0x20] sm:$0xf]
    %v54 = vld [vmem:[#allocation2 + $0x24] sm:$0xff]
    %v55 = vld [vmem:[#allocation2 + $0x2c] sm:$0xf]
    %v56 = vld [vmem:[#allocation5] sm:$0xf]
    %v57 = vld [vmem:[#allocation5 + $0x4] sm:$0xf]
    %v58 = vld [vmem:[#allocation5 + $0x8] sm:$0xf]
    %v59 = vld [vmem:[#allocation5 + $0xc] sm:$0xf]
    %v60 = vld [vmem:[#allocation5 + $0x10] sm:$0xf]
    %v61 = vld [vmem:[#allocation5 + $0x14] sm:$0xf]
    %v62 = vld [vmem:[#allocation5 + $0x18] sm:$0xf]
    %v63 = vld [vmem:[#allocation5 + $0x1c] sm:$0xf]
    %v64 = vld [vmem:[#allocation5 + $0x20] sm:$0xf]
    %v65 = vld [vmem:[#allocation5 + $0x24] sm:$0xf]
    %v66 = vld [vmem:[#allocation5 + $0x28] sm:$0xf]
    %v67 = vld [vmem:[#allocation5 + $0x2c] sm:$0xf]
    %v68 = vld [vmem:[#allocation5 + $0x30] sm:$0xf]
    %v69 = vld [vmem:[#allocation5 + $0x34] sm:$0xf]
    %v70 = vld [vmem:[#allocation5 + $0x38] sm:$0xf]
    %v71 = vld [vmem:[#allocation5 + $0x3c] sm:$0xf]
    %v72 = vld [vmem:[#allocation5 + $0x40] sm:$0xf]
    %v73 = vld [vmem:[#allocation5 + $0x44] sm:$0xf]
    %v74 = vld [vmem:[#allocation5 + $0x48] sm:$0xf]
    %v75 = vld [vmem:[#allocation5 + $0x4c] sm:$0xf]
    %v76 = vld [vmem:[#allocation5 + $0x50] sm:$0xf]
    %v77 = vld [vmem:[#allocation5 + $0x54] sm:$0xf]
    %v78 = vld [vmem:[#allocation5 + $0x58] sm:$0xf]
    %v79 = vld [vmem:[#allocation5 + $0x5c] sm:$0xf]
    %v80 = vld [vmem:[#allocation5 + $0x60] sm:$0xf]
    %v81 = vld [vmem:[#allocation5 + $0x64] sm:$0xf]
    %v82 = vld [vmem:[#allocation5 + $0x68] sm:$0xf]
    %v83 = vld [vmem:[#allocation5 + $0x6c] sm:$0xf]
    %v84 = vld [vmem:[#allocation5 + $0x70] sm:$0xf]
    %v85 = vld [vmem:[#allocation5 + $0x74] sm:$0xf]
    %v86 = vld [vmem:[#allocation5 + $0x78] sm:$0xf]
    %v87 = vld [vmem:[#allocation5 + $0x7c] sm:$0xf]
    %v88 = vld [vmem:[#allocation5 + $0x80] sm:$0xf]
    %v89 = vld [vmem:[#allocation5 + $0x84] sm:$0xf]
    %v90 = vld [vmem:[#allocation5 + $0x88] sm:$0xf]
    %v91 = vld [vmem:[#allocation5 + $0x8c] sm:$0xf]
    %v92 = vld [vmem:[#allocation5 + $0x90] sm:$0xf]
    %v93 = vld [vmem:[#allocation5 + $0x94] sm:$0xf]
    %v94 = vld [vmem:[#allocation5 + $0x98] sm:$0xf]
    %v95 = vld [vmem:[#allocation5 + $0x9c] sm:$0xf]
    %v96 = vld [vmem:[%s2] sm:$0x1]
    %v98 = vperm.slane %v96, 0
    %v108 = vunpack.c.l.b16 %v48
    %v109 = vunpack.c.h.b16 %v48
    %v110 = vunpack.c.l.b16 %v49
    %v111 = vunpack.c.l.b16 %v50
    %v112 = vunpack.c.h.b16 %v50
    %v113 = vunpack.c.l.b16 %v51
    %v114 = vunpack.c.l.b16 %v52
    %v115 = vunpack.c.h.b16 %v52
    %v116 = vunpack.c.l.b16 %v53
    %v117 = vunpack.c.l.b16 %v54
    %v118 = vunpack.c.h.b16 %v54
    %v119 = vunpack.c.l.b16 %v55
    %v120 = vpack.c.b16 %v111, %v108
    %v121 = vpack.c.b16 %v112, %v109
    %v122 = vpack.c.b16 %v113, %v110
    %v123 = vpack.c.b16 %v117, %v114
    %v124 = vpack.c.b16 %v118, %v115
    %v125 = vpack.c.b16 %v119, %v116
    %v170 = vunpack.c.l.b16 %v56
    %v171 = vunpack.c.l.b16 %v57
    %v172 = vunpack.c.l.b16 %v58
    %v173 = vunpack.c.l.b16 %v59
    %v174 = vunpack.c.l.b16 %v60
    %v175 = vunpack.c.l.b16 %v61
    %v176 = vunpack.c.l.b16 %v62
    %v177 = vunpack.c.l.b16 %v63
    %v178 = vunpack.c.l.b16 %v64
    %v179 = vunpack.c.l.b16 %v65
    %v180 = vunpack.c.l.b16 %v66
    %v181 = vunpack.c.l.b16 %v67
    %v182 = vunpack.c.l.b16 %v68
    %v183 = vunpack.c.l.b16 %v69
    %v184 = vunpack.c.l.b16 %v70
    %v185 = vunpack.c.l.b16 %v71
    %v186 = vunpack.c.l.b16 %v72
    %v187 = vunpack.c.l.b16 %v73
    %v188 = vunpack.c.l.b16 %v74
    %v189 = vunpack.c.l.b16 %v75
    %v190 = vunpack.c.l.b16 %v76
    %v191 = vunpack.c.l.b16 %v77
    %v192 = vunpack.c.l.b16 %v78
    %v193 = vunpack.c.l.b16 %v79
    %v194 = vunpack.c.l.b16 %v80
    %v195 = vunpack.c.l.b16 %v81
    %v196 = vunpack.c.l.b16 %v82
    %v197 = vunpack.c.l.b16 %v83
    %v198 = vunpack.c.l.b16 %v84
    %v199 = vunpack.c.l.b16 %v85
    %v200 = vunpack.c.l.b16 %v86
    %v201 = vunpack.c.l.b16 %v87
    %v202 = vunpack.c.l.b16 %v88
    %v203 = vunpack.c.l.b16 %v89
    %v204 = vunpack.c.l.b16 %v90
    %v205 = vunpack.c.l.b16 %v91
    %v206 = vunpack.c.l.b16 %v92
    %v207 = vunpack.c.l.b16 %v93
    %v208 = vunpack.c.l.b16 %v94
    %v209 = vunpack.c.l.b16 %v95
    %v210 = vpack.c.b16 %v171, %v170
    %v211 = vpack.c.b16 %v173, %v172
    %v212 = vpack.c.b16 %v175, %v174
    %v213 = vpack.c.b16 %v177, %v176
    %v214 = vpack.c.b16 %v179, %v178
    %v215 = vpack.c.b16 %v181, %v180
    %v216 = vpack.c.b16 %v183, %v182
    %v217 = vpack.c.b16 %v185, %v184
    %v218 = vpack.c.b16 %v187, %v186
    %v219 = vpack.c.b16 %v189, %v188
    %v220 = vpack.c.b16 %v191, %v190
    %v221 = vpack.c.b16 %v193, %v192
    %v222 = vpack.c.b16 %v195, %v194
    %v223 = vpack.c.b16 %v197, %v196
    %v224 = vpack.c.b16 %v199, %v198
    %v225 = vpack.c.b16 %v201, %v200
    %v226 = vpack.c.b16 %v203, %v202
    %v227 = vpack.c.b16 %v205, %v204
    %v228 = vpack.c.b16 %v207, %v206
    %v229 = vpack.c.b16 %v209, %v208
    %vm250 = vcmask 523264
    %v252 = vsel %vm250, %v122, 0
    %v255 = vsel %vm250, %v125, 0
    %257 = vmatpush.bf16.msra.mxu0 %v217
    %258 = vmatpush.bf16.msra.mxu0 %v216
    %259 = vmatpush.bf16.msra.mxu0 %v215
    %260 = vmatpush.bf16.msra.mxu0 %v214
    %261 = vmatpush.bf16.msra.mxu0 %v213
    %262 = vmatpush.bf16.msra.mxu0 %v212
    %263 = vmatpush.bf16.msra.mxu0 %v211
    %264 = vmatpush.bf16.msra.mxu0 %v210
    %265 = vmatmul.bf16.gmra.mxu0 %v120
    %v266 = vpop.f32.mrf.mxu0
    %v267 = vadd.f32 %v98, %v266
    %v268 = vpop.f32.mrf.mxu0
    %v269 = vadd.f32 %v98, %v268
    %270 = vmatmul.bf16.gmra.mxu0 %v123
    %v271 = vpop.f32.mrf.mxu0
    %v272 = vadd.f32 %v98, %v271
    %v273 = vpop.f32.mrf.mxu0
    %v274 = vadd.f32 %v98, %v273
    %275 = vdwg.mxu0
    %276 = vmatpush.bf16.msra.mxu0 %v225
    %277 = vmatpush.bf16.msra.mxu0 %v224
    %278 = vmatpush.bf16.msra.mxu0 %v223
    %279 = vmatpush.bf16.msra.mxu0 %v222
    %280 = vmatpush.bf16.msra.mxu0 %v221
    %281 = vmatpush.bf16.msra.mxu0 %v220
    %282 = vmatpush.bf16.msra.mxu0 %v219
    %283 = vmatpush.bf16.msra.mxu0 %v218
    %284 = vmatmul.bf16.gmra.mxu0 %v121
    %v285 = vpop.f32.mrf.mxu0
    %v286 = vadd.f32 %v267, %v285
    %v287 = vpop.f32.mrf.mxu0
    %v288 = vadd.f32 %v269, %v287
    %289 = vmatmul.bf16.gmra.mxu0 %v124
    %v290 = vpop.f32.mrf.mxu0
    %v291 = vadd.f32 %v272, %v290
    %v292 = vpop.f32.mrf.mxu0
    %v293 = vadd.f32 %v274, %v292
    %294 = vdwg.mxu0
    %295 = vmatpush.bf16.msra.mxu0 0
    %296 = vmatpush.bf16.msra.mxu0 0
    %297 = vmatpush.bf16.msra.mxu0 0
    %298 = vmatpush.bf16.msra.mxu0 0
    %299 = vmatpush.bf16.msra.mxu0 %v229
    %300 = vmatpush.bf16.msra.mxu0 %v228
    %301 = vmatpush.bf16.msra.mxu0 %v227
    %302 = vmatpush.bf16.msra.mxu0 %v226
    %303 = vmatmul.bf16.gmra.mxu0 %v252
    %v304 = vpop.f32.mrf.mxu0
    %v305 = vadd.f32 %v286, %v304
    %v306 = vpop.f32.mrf.mxu0
    %v307 = vadd.f32 %v288, %v306
    %308 = vmatmul.bf16.gmra.mxu0 %v255
    %v309 = vpop.f32.mrf.mxu0
    %v310 = vadd.f32 %v291, %v309
    %v311 = vpop.f32.mrf.mxu0
    %v312 = vadd.f32 %v293, %v311
    %313 = vdwg.mxu0
    %314 = vst [vmem:[#allocation7] sm:$0xff] %v305
    %315 = vst [vmem:[#allocation7 + $0x8] sm:$0xff] %v307
    %316 = vst [vmem:[#allocation7 + $0x10] sm:$0xff] %v310
    %317 = vst [vmem:[#allocation7 + $0x18] sm:$0xff] %v312
    // Predicated region
    $region22: #{tpu_custom_call.1} parent=1 // pred_check
      _
    $region23: #{tpu_custom_call.1} parent=1 // pred_check_branch
      %319 = sbr.rel (0) target = $region25
    $region24: #{tpu_custom_call.1} parent=1 // pred_region
      %321 = vsyncadd [#allocation4], 0
      %s322 = sshll.u32 [#allocation7], 4
      %s323 = int_to_ptr.vmem [resolvable:$true] %s322
      %s324 = sshll.u32 %s3, 4
      %s325 = int_to_ptr.hbm [resolvable:$true] %s324
      %330 = dma.vmem_to_hbm [thread:$0]  %s323, 512, %s325, [#allocation4], 128, 128, 8
    $region25: #{tpu_custom_call.1} parent=1 // pred_fallthru
      _
    // Predicated region
    $region26: #{tpu_custom_call.1} parent=1 // pred_check
      _
    $region27: #{tpu_custom_call.1} parent=1 // pred_check_branch
      %332 = sbr.rel (0) target = $region29
    $region28: #{tpu_custom_call.1} parent=1 // pred_region
      %334 = dma.done [#allocation4], 512
    $region29: #{tpu_custom_call.1} parent=1 // pred_fallthru
      _
    %335 = vsyncpa [#allocation3], 1
    %336 = vsyncpa [#allocation6], 1
    %337 = vsyncpa [#allocation4], 1

</llo_original>
